<compile_context>
chip_gen: v7x
topology: tpu7x:2x2x1
jax: 0.10.0
libtpu: 0.0.40
codegen_flags: <defaults>
</compile_context>

<pallas_src>
import math
import functools

import jax
import jax.numpy as jnp
from jax.experimental import pallas as pl
from jax.experimental.pallas import tpu as pltpu


_IGNORE_INDEX = -100                 # nn.CrossEntropyLoss default
_VMEM_LIMIT_BYTES = 32 * 1024 * 1024


def _round_up(x, m):
    return ((x + m - 1) // m) * m


def _lane_fold(x):
    """(rows, T) with T % 128 == 0 -> (rows, 128) by summing 128-lane chunks.

    Static lane-aligned slices => plain VPU adds across vregs, no relayout/XLU work.
    """
    t = x.shape[-1]
    acc = x[:, 0:128]
    for c in range(1, t // 128):
        acc = acc + x[:, c * 128:(c + 1) * 128]
    return acc


# ------------------------------------------------------------------ kernels --

def _cross_entropy_kernel(logits_ref, labels_ref, out_ref, *,
                          class_dims, n_tokens, ignore_index):
    """Per-block lane-dense partials.

    out_ref block (1, 2G, 128):
      rows [0, G)  : per-group NLL sum over valid tokens of this block (per lane)
      rows [G, 2G) : per-group valid-token count of this block        (per lane)
    """
    i = pl.program_id(0)
    t = logits_ref.shape[1]                                   # tile (static)

    # Tail mask against the true token count (replaces wrapper-side padding).
    tok = jax.lax.broadcasted_iota(jnp.int32, (1, t), 1) + i * t
    in_range = tok < n_tokens

    logits = logits_ref[...].astype(jnp.float32)              # (C_total, T)
    labels = labels_ref[...]                                  # (G, T) int32

    nll_rows, cnt_rows = [], []
    start = 0
    for g, cdim in enumerate(class_dims):                     # static Python loop
        grp = logits[start:start + cdim, :]                   # (Cg, T)
        start += cdim
        lbl = labels[g:g + 1, :]                              # (1, T)

        m = jnp.max(grp, axis=0, keepdims=True)                                # (1,T)
        lse = jnp.log(jnp.sum(jnp.exp(grp - m), axis=0, keepdims=True))        # (1,T)
        cls = jax.lax.broadcasted_iota(jnp.int32, grp.shape, 0)                # (Cg,T)
        target = jnp.sum(jnp.where(cls == lbl, grp, 0.0), axis=0, keepdims=True)

        valid = (lbl != ignore_index) & in_range
        # TODO(synk): out-of-range labels (other than ignore_index) silently gather a
        # target of 0 instead of erroring like PyTorch (documented precondition).
        nll = jnp.where(valid, (m + lse) - target, 0.0)        # garbage lanes -> 0
        nll_rows.append(_lane_fold(nll))                       # (1, 128)
        cnt_rows.append(_lane_fold(valid.astype(jnp.float32))) # (1, 128)

    out_ref[0] = jnp.concatenate(nll_rows + cnt_rows, axis=0)  # (2G, 128) tiny store


def _mse_kernel(pred_ref, y_ref, out_ref, *, n_rows):
    """Per-block (1, 128) partial sums of squared differences."""
    i = pl.program_id(0)
    tr = pred_ref.shape[0]
    row = jax.lax.broadcasted_iota(jnp.int32, (tr, 128), 0) + i * tr
    d = pred_ref[...].astype(jnp.float32) - y_ref[...].astype(jnp.float32)
    sq = jnp.where(row < n_rows, d * d, 0.0)                   # mask garbage tail rows
    out_ref[0] = jnp.sum(sq, axis=0, keepdims=True)            # (1, 128)


# ---------------------------------------------------------------- jitted core --

@functools.partial(jax.jit, static_argnames=("class_dims", "scale", "ignore_index",
                                             "max_block_bytes", "max_lanes"))
def _ce_forward(logits, labels, *, class_dims, scale, ignore_index,
                max_block_bytes, max_lanes):
    c_total = sum(class_dims)
    n_groups = len(class_dims)
    n = logits.shape[0]

    # Lane-dense layout: classes -> sublanes, tokens -> lanes.
    # TODO(synk): this transpose is one extra HBM copy; pltpu allow_input_fusion could
    # fold it into the pallas operand but is left off for portability.
    logits_t = logits.T                                        # (C_total, N), HBM dtype
    labels_t = labels.T                                        # (G, N)

    # Dtype-aware block sizing (bf16 counts 2 B/logit), ~max_block_bytes per block,
    # capped so per-row f32 temporaries stay small even for tiny c_total.
    itemsize = jnp.dtype(logits.dtype).itemsize
    bytes_per_tok = itemsize * c_total + 4 * n_groups
    tile_by_bytes = (max_block_bytes // bytes_per_tok) // 128 * 128
    tile = max(128, min(_round_up(n, 128), max_lanes, tile_by_bytes))
    num_blocks = pl.cdiv(n, tile)

    partial = pl.pallas_call(
        functools.partial(_cross_entropy_kernel, class_dims=class_dims,
                          n_tokens=n, ignore_index=ignore_index),
        out_shape=jax.ShapeDtypeStruct((num_blocks, 2 * n_groups, 128), jnp.float32),
        grid=(num_blocks,),
        in_specs=[pl.BlockSpec((c_total, tile), lambda i: (0, i)),
                  pl.BlockSpec((n_groups, tile), lambda i: (0, i))],
        out_specs=pl.BlockSpec((1, 2 * n_groups, 128), lambda i: (i, 0, 0)),
        compiler_params=pltpu.CompilerParams(
            dimension_semantics=("parallel",),        # dual-TC sharding on v7x
            vmem_limit_bytes=_VMEM_LIMIT_BYTES),
    )(logits_t, labels_t)

    per_row = jnp.sum(partial, axis=(0, 2))                    # (2G,) tiny reduction
    sums = per_row[:n_groups]
    cnts = per_row[n_groups:]
    # NaN guard: a group with zero valid (non-ignored) tokens contributes 0, not NaN.
    group_mean = jnp.where(cnts > 0, sums / jnp.maximum(cnts, 1.0), 0.0)
    return jnp.sum(group_mean) * scale


@functools.partial(jax.jit, static_argnames=("scale", "max_rows_per_block"))
def _mse_forward(pred, y_true, *, scale, max_rows_per_block):
    numel = pred.size                                          # static
    pred_f = pred.reshape(-1)
    y_f = y_true.reshape(-1)

    l128 = _round_up(numel, 128)
    if l128 != numel:
        # TODO(synk): pad-to-lane-multiple is a full copy, but only triggers when
        # numel % 128 != 0 and regression heads are tiny; zeros contribute 0 to the sum.
        pred_f = jnp.pad(pred_f, (0, l128 - numel))
        y_f = jnp.pad(y_f, (0, l128 - numel))
    rows = l128 // 128
    pred2 = pred_f.reshape(rows, 128)
    y2 = y_f.reshape(rows, 128)

    tile_r = min(rows, max_rows_per_block)                     # full-dim or mult of 8
    num_blocks = pl.cdiv(rows, tile_r)

    partial = pl.pallas_call(
        functools.partial(_mse_kernel, n_rows=rows),
        out_shape=jax.ShapeDtypeStruct((num_blocks, 1, 128), jnp.float32),
        grid=(num_blocks,),
        in_specs=[pl.BlockSpec((tile_r, 128), lambda i: (i, 0)),
                  pl.BlockSpec((tile_r, 128), lambda i: (i, 0))],
        out_specs=pl.BlockSpec((1, 1, 128), lambda i: (i, 0, 0)),
        compiler_params=pltpu.CompilerParams(
            dimension_semantics=("parallel",),
            vmem_limit_bytes=_VMEM_LIMIT_BYTES),
    )(pred2, y2)

    return jnp.sum(partial) / jnp.float32(numel) * scale


# ----------------------------------------------------------------- wrappers --

def cross_entropy_loss(logits, labels, class_dims, *, scale=1.0,
                       max_block_bytes=2 * 1024 * 1024, max_lanes=16384):
    """Sum over class groups of nn.CrossEntropyLoss (mean over non-ignored targets)."""
    class_dims = tuple(int(c) for c in class_dims)
    logits = jnp.asarray(logits)                               # keep HBM dtype (bf16 ok)
    labels = jnp.asarray(labels, dtype=jnp.int32)
    if labels.ndim == 1:
        labels = labels[:, None]
    return _ce_forward(logits, labels, class_dims=class_dims, scale=float(scale),
                       ignore_index=_IGNORE_INDEX,
                       max_block_bytes=int(max_block_bytes), max_lanes=int(max_lanes))


def mse_loss(pred, y_true, *, scale=1.0, max_rows_per_block=4096):
    """nn.MSELoss(): mean of squared differences over all elements."""
    return _mse_forward(jnp.asarray(pred), jnp.asarray(y_true),
                        scale=float(scale), max_rows_per_block=int(max_rows_per_block))


class ScaledMultiTaskLossPallas:
    """JAX/Pallas port of ScaledMultiTaskLoss (Muppet scaling)."""

    def __init__(self, task_class_dims, scaling_type='linear'):
        self.task_class_dims = task_class_dims
        self.scaling_type = scaling_type  # 'linear' or 'log'

    def __call__(self, x, y_true, output):
        task_type = x['task_type']
        task_name = x['task_name']
        n_tasks = len(self.task_class_dims)

        if task_type in ('classification', 'sequence labeling'):
            class_dims = tuple(int(c) for c in self.task_class_dims[task_name])
            if self.scaling_type == 'linear':
                scale = 1.0 / float(sum(class_dims))
            elif self.scaling_type == 'log':
                scale = 1.0 / math.log(sum(class_dims))
            else:
                raise ValueError('scaling_type must be either linear or log.')
            scale = scale / n_tasks                     # Muppet scaling + 1/n_tasks,
            #                                             folded into the jitted program
            if task_type == 'sequence labeling':
                # TODO(synk): labels are expected pre-stacked as (seq_len, n_groups)
                # arrays per sequence (the torch module builds them with np.vstack).
                logits = jnp.concatenate([jnp.asarray(o) for o in output], axis=0)
                labels = jnp.concatenate(
                    [jnp.asarray(yt)[: o.shape[0]] for yt, o in zip(y_true, output)],
                    axis=0)
            else:
                logits, labels = output, y_true
            return cross_entropy_loss(logits, labels, class_dims, scale=scale)
        elif task_type == 'regression':
            return mse_loss(output, y_true, scale=1.0 / n_tasks)
        else:
            raise ValueError
        # (unreachable)


# ------------------------------------------------------------- reference ----

def _ce_reference(logits, labels, class_dims, ignore_index=_IGNORE_INDEX):
    total = 0.0
    for g, cdim in enumerate(class_dims):
        start = sum(class_dims[:g])
        grp = logits[:, start:start + cdim].astype(jnp.float32)
        logp = jax.nn.log_softmax(grp, axis=-1)
        lbl = labels[:, g].astype(jnp.int32)
        valid = lbl != ignore_index
        safe = jnp.where(valid, lbl, 0)
        nll = -jnp.take_along_axis(logp, safe[:, None], axis=-1)[:, 0]
        total = total + jnp.sum(jnp.where(valid, nll, 0.0)) / jnp.sum(valid)
    return total


if __name__ == "__main__":
    key = jax.random.PRNGKey(0)
    keys = jax.random.split(key, 10)
    k1, k2, k3, k4, k5, k6, k7, k8, k9, k10 = keys

    task_class_dims = {
        'emotions_cls': [2, 3],
        'pos_tagging': [4],
        'similarity_reg': [1],
    }
    loss_mod = ScaledMultiTaskLossPallas(task_class_dims, scaling_type='linear')

    # --- classification task: batch=8, class groups [2, 3] --------------------
    B = 8
    cls_logits = jax.random.normal(k1, (B, 5), dtype=jnp.float32)
    cls_labels = jnp.stack(
        [jax.random.randint(k2, (B,), 0, 2), jax.random.randint(k3, (B,), 0, 3)],
        axis=1).astype(jnp.int32)
    x_cls = {'task_type': 'classification', 'task_name': 'emotions_cls'}
    loss_cls = loss_mod(x_cls, cls_labels, cls_logits)

    # --- sequence labeling: 2 sequences of length 8, 4 tags, some -100 padding -
    seq_logits = [jax.random.normal(k4, (8, 4), dtype=jnp.float32),
                  jax.random.normal(k5, (8, 4), dtype=jnp.float32)]
    seq_labels = [jax.random.randint(k4, (8, 1), 0, 4).astype(jnp.int32),
                  jax.random.randint(k5, (8, 1), 0, 4).astype(jnp.int32)]
    seq_labels[0] = seq_labels[0].at[6:].set(_IGNORE_INDEX)   # ignored (padded) tags
    x_seq = {'task_type': 'sequence labeling', 'task_name': 'pos_tagging'}
    loss_seq = loss_mod(x_seq, seq_labels, seq_logits)

    # --- regression task: batch=8, 1 output (numel not a 128 multiple) ---------
    reg_pred = jax.random.normal(k6, (B, 1), dtype=jnp.float32)
    reg_true = jax.random.normal(k2, (B, 1), dtype=jnp.float32)
    x_reg = {'task_type': 'regression', 'task_name': 'similarity_reg'}
    loss_reg = loss_mod(x_reg, reg_true, reg_pred)

    jax.block_until_ready((loss_cls, loss_seq, loss_reg))

    # sanity checks vs. pure-JAX reference of the PyTorch semantics
    ref_cls = _ce_reference(cls_logits, cls_labels, [2, 3]) / sum([2, 3]) / 3
    ref_seq = (_ce_reference(jnp.concatenate(seq_logits, 0),
                             jnp.concatenate(seq_labels, 0), [4]) / 4) / 3
    ref_reg = jnp.mean((reg_pred - reg_true) ** 2) / 3
    assert jnp.allclose(loss_cls, ref_cls, rtol=1e-5, atol=1e-5)
    assert jnp.allclose(loss_seq, ref_seq, rtol=1e-5, atol=1e-5)
    assert jnp.allclose(loss_reg, ref_reg, rtol=1e-5, atol=1e-5)

    # --- multi-block CE path: bf16 in HBM, N=1200 (not a tile multiple), parallel
    #     per-block partials + in-kernel tail masking ----------------------------
    big_logits = jax.random.normal(k7, (1200, 4), dtype=jnp.float32).astype(jnp.bfloat16)
    big_labels = jax.random.randint(k8, (1200, 1), 0, 4).astype(jnp.int32)
    big_labels = big_labels.at[::7].set(_IGNORE_INDEX)
    got_big = cross_entropy_loss(big_logits, big_labels, (4,), max_block_bytes=4096)
    ref_big = _ce_reference(big_logits, big_labels, [4])
    jax.block_until_ready(got_big)
    assert jnp.allclose(got_big, ref_big, rtol=1e-4, atol=1e-4)

    # --- multi-block MSE path ---------------------------------------------------
    mp = jax.random.normal(k9, (64, 32), dtype=jnp.float32)
    mt = jax.random.normal(k10, (64, 32), dtype=jnp.float32)
    got_mse = mse_loss(mp, mt, max_rows_per_block=8)
    ref_mse = jnp.mean((mp - mt) ** 2)
    jax.block_until_ready(got_mse)
    assert jnp.allclose(got_mse, ref_mse, rtol=1e-5, atol=1e-5)

    print("KERNEL_OK")
</pallas_src>

<mosaic_0001>
module attributes {stable_mosaic.version = 11 : i64} {
  func.func @_cross_entropy_kernel(%arg0: i32, %arg1: memref<5x128xf32, #tpu.memory_space<vmem>>, %arg2: memref<2x128xi32, #tpu.memory_space<vmem>>, %arg3: memref<1x4x128xf32, #tpu.memory_space<vmem>>) attributes {dimension_semantics = [#tpu.dimension_semantics<parallel>], iteration_bounds = array<i64: 1>, scalar_prefetch = 0 : i64, scratch_operands = 0 : i64, tpu.core_type = #tpu.core_type<tc>, window_params = [{transform_indices = @transform_0, window_bounds = array<i64: 5, 128>}, {transform_indices = @transform_1, window_bounds = array<i64: 2, 128>}, {transform_indices = @transform_2, window_bounds = array<i64: 1, 4, 128>}]} {
    %0 = tpu.iota {dimensions = array<i32: 1>} : vector<1x128xi32>
    %c128_i32 = arith.constant 128 : i32
    %1 = arith.muli %arg0, %c128_i32 : i32
    %2 = vector.broadcast %1 : i32 to vector<1x128xi32>
    %3 = arith.addi %0, %2 : vector<1x128xi32>
    %c8_i32 = arith.constant 8 : i32
    %4 = vector.broadcast %c8_i32 : i32 to vector<1x128xi32>
    %5 = arith.cmpi slt, %3, %4 : vector<1x128xi32>
    %c0 = arith.constant 0 : index
    %c0_0 = arith.constant 0 : index
    %6 = vector.load %arg1[%c0, %c0_0] : memref<5x128xf32, #tpu.memory_space<vmem>>, vector<5x128xf32>
    %c0_1 = arith.constant 0 : index
    %c0_2 = arith.constant 0 : index
    %7 = vector.load %arg2[%c0_1, %c0_2] : memref<2x128xi32, #tpu.memory_space<vmem>>, vector<2x128xi32>
    %8 = vector.extract_strided_slice %6 {offsets = [0, 0], sizes = [2, 128], strides = [1, 1]} : vector<5x128xf32> to vector<2x128xf32>
    %9 = vector.extract_strided_slice %7 {offsets = [0, 0], sizes = [1, 128], strides = [1, 1]} : vector<2x128xi32> to vector<1x128xi32>
    %cst = arith.constant dense<0xFF800000> : vector<128xf32>
    %10 = vector.multi_reduction <maximumf>, %8, %cst [0] : vector<2x128xf32> to vector<128xf32>
    %11 = vector.shape_cast %10 : vector<128xf32> to vector<1x128xf32>
    %12 = vector.broadcast %11 : vector<1x128xf32> to vector<2x128xf32>
    %13 = arith.subf %8, %12 : vector<2x128xf32>
    %14 = math.exp %13 : vector<2x128xf32>
    %cst_3 = arith.constant dense<0.000000e+00> : vector<128xf32>
    %15 = vector.multi_reduction <add>, %14, %cst_3 [0] : vector<2x128xf32> to vector<128xf32>
    %16 = vector.shape_cast %15 : vector<128xf32> to vector<1x128xf32>
    %17 = math.log %16 : vector<1x128xf32>
    %18 = tpu.iota {dimensions = array<i32: 0>} : vector<2x128xi32>
    %19 = vector.broadcast %9 : vector<1x128xi32> to vector<2x128xi32>
    %20 = arith.cmpi eq, %18, %19 : vector<2x128xi32>
    %cst_4 = arith.constant 0.000000e+00 : f32
    %21 = vector.broadcast %cst_4 : f32 to vector<2x128xf32>
    %22 = arith.select %20, %8, %21 : vector<2x128xi1>, vector<2x128xf32>
    %cst_5 = arith.constant dense<0.000000e+00> : vector<128xf32>
    %23 = vector.multi_reduction <add>, %22, %cst_5 [0] : vector<2x128xf32> to vector<128xf32>
    %24 = vector.shape_cast %23 : vector<128xf32> to vector<1x128xf32>
    %c-100_i32 = arith.constant -100 : i32
    %25 = vector.broadcast %c-100_i32 : i32 to vector<1x128xi32>
    %26 = arith.cmpi ne, %9, %25 : vector<1x128xi32>
    %27 = arith.andi %26, %5 : vector<1x128xi1>
    %28 = arith.addf %11, %17 : vector<1x128xf32>
    %29 = arith.subf %28, %24 : vector<1x128xf32>
    %cst_6 = arith.constant 0.000000e+00 : f32
    %30 = vector.broadcast %cst_6 : f32 to vector<1x128xf32>
    %31 = arith.select %27, %29, %30 : vector<1x128xi1>, vector<1x128xf32>
    %32 = arith.extui %27 : vector<1x128xi1> to vector<1x128xi32>
    %33 = arith.sitofp %32 : vector<1x128xi32> to vector<1x128xf32>
    %34 = vector.extract_strided_slice %6 {offsets = [2, 0], sizes = [3, 128], strides = [1, 1]} : vector<5x128xf32> to vector<3x128xf32>
    %35 = vector.extract_strided_slice %7 {offsets = [1, 0], sizes = [1, 128], strides = [1, 1]} : vector<2x128xi32> to vector<1x128xi32>
    %cst_7 = arith.constant dense<0xFF800000> : vector<128xf32>
    %36 = vector.multi_reduction <maximumf>, %34, %cst_7 [0] : vector<3x128xf32> to vector<128xf32>
    %37 = vector.shape_cast %36 : vector<128xf32> to vector<1x128xf32>
    %38 = vector.broadcast %37 : vector<1x128xf32> to vector<3x128xf32>
    %39 = arith.subf %34, %38 : vector<3x128xf32>
    %40 = math.exp %39 : vector<3x128xf32>
    %cst_8 = arith.constant dense<0.000000e+00> : vector<128xf32>
    %41 = vector.multi_reduction <add>, %40, %cst_8 [0] : vector<3x128xf32> to vector<128xf32>
    %42 = vector.shape_cast %41 : vector<128xf32> to vector<1x128xf32>
    %43 = math.log %42 : vector<1x128xf32>
    %44 = tpu.iota {dimensions = array<i32: 0>} : vector<3x128xi32>
    %45 = vector.broadcast %35 : vector<1x128xi32> to vector<3x128xi32>
    %46 = arith.cmpi eq, %44, %45 : vector<3x128xi32>
    %cst_9 = arith.constant 0.000000e+00 : f32
    %47 = vector.broadcast %cst_9 : f32 to vector<3x128xf32>
    %48 = arith.select %46, %34, %47 : vector<3x128xi1>, vector<3x128xf32>
    %cst_10 = arith.constant dense<0.000000e+00> : vector<128xf32>
    %49 = vector.multi_reduction <add>, %48, %cst_10 [0] : vector<3x128xf32> to vector<128xf32>
    %50 = vector.shape_cast %49 : vector<128xf32> to vector<1x128xf32>
    %c-100_i32_11 = arith.constant -100 : i32
    %51 = vector.broadcast %c-100_i32_11 : i32 to vector<1x128xi32>
    %52 = arith.cmpi ne, %35, %51 : vector<1x128xi32>
    %53 = arith.andi %52, %5 : vector<1x128xi1>
    %54 = arith.addf %37, %43 : vector<1x128xf32>
    %55 = arith.subf %54, %50 : vector<1x128xf32>
    %cst_12 = arith.constant 0.000000e+00 : f32
    %56 = vector.broadcast %cst_12 : f32 to vector<1x128xf32>
    %57 = arith.select %53, %55, %56 : vector<1x128xi1>, vector<1x128xf32>
    %58 = arith.extui %53 : vector<1x128xi1> to vector<1x128xi32>
    %59 = arith.sitofp %58 : vector<1x128xi32> to vector<1x128xf32>
    %60 = tpu.concatenate %31, %57, %33, %59 in 0 : vector<1x128xf32>, vector<1x128xf32>, vector<1x128xf32>, vector<1x128xf32> -> vector<4x128xf32>
    %c0_13 = arith.constant 0 : index
    %c0_14 = arith.constant 0 : index
    %c0_15 = arith.constant 0 : index
    %61 = vector.load %arg3[%c0_13, %c0_14, %c0_15] : memref<1x4x128xf32, #tpu.memory_space<vmem>>, vector<1x4x128xf32>
    %62 = vector.shape_cast %61 : vector<1x4x128xf32> to vector<4x128xf32>
    %63 = vector.shape_cast %60 : vector<4x128xf32> to vector<1x4x128xf32>
    tpu.vector_store %arg3[%c0_13, %c0_14, %c0_15], %63 {strides = array<i32>} : memref<1x4x128xf32, #tpu.memory_space<vmem>>, vector<1x4x128xf32>,
    return
  }
  func.func @transform_0(%arg0: i32) -> (i32, i32) {
    %c0_i32 = arith.constant 0 : i32
    %c0_i32_0 = arith.constant 0 : i32
    return %c0_i32, %arg0 : i32, i32
  }
  func.func @transform_1(%arg0: i32) -> (i32, i32) {
    %c0_i32 = arith.constant 0 : i32
    %c0_i32_0 = arith.constant 0 : i32
    return %c0_i32, %arg0 : i32, i32
  }
  func.func @transform_2(%arg0: i32) -> (i32, i32, i32) {
    %c0_i32 = arith.constant 0 : i32
    %c0_i32_0 = arith.constant 0 : i32
    %c0_i32_1 = arith.constant 0 : i32
    return %arg0, %c0_i32, %c0_i32_0 : i32, i32, i32
  }
}

</mosaic_0001>

<llo_original>
// kernel: _ce_forward.1
$region0: #{_ce_forward.1}
  #allocation0 [shape = 'u32[]', space=smem, size = 0x4, offset = 0x4, fixed_abs, tag = 'smem constant byte address 0x4 - core index']
  #allocation1 [shape = 'u32[144,128]{1,0:T(1,128)}', space=vmem, size = 0x12000, scoped, tag = 'internal scratch']
  %s0 = inlined_call_operand.vmem [shape: f32[5,8], index: 0, kind: input, shape index: {}]
  %s1 = inlined_call_operand.vmem [shape: s32[2,8], index: 1, kind: input, shape index: {}]
  %s2 = inlined_call_operand.vmem [shape: f32[1,4,128], index: 2, kind: output, shape index: {}]
  %s3 = sld [smem:[#allocation0]]
  $region18: #{_ce_forward.1} parent=0
    _
  %s5 = ssub.s32 1, %s3
  %s6 = scalar_select 0, %s5, %s3
  // Predicated region
  $region2: #{_ce_forward.1} parent=0 // pred_check
    _
  $region3: #{_ce_forward.1} parent=0 // pred_check_branch
    %8 = sbr.rel (0) target = $region5
  $region4: #{_ce_forward.1} parent=0 // pred_region
    _
  $region5: #{_ce_forward.1} parent=0 // pred_fallthru
    _
  // Predicated region
  $region6: #{_ce_forward.1} parent=0 // pred_check
    _
  $region7: #{_ce_forward.1} parent=0 // pred_check_branch
    %10 = sbr.rel (0) target = $region9
  $region8: #{_ce_forward.1} parent=0 // pred_region
    _
  $region9: #{_ce_forward.1} parent=0 // pred_fallthru
    _
  %v11 = vlaneseq
  %v12 = vand.u32 %v11, 127
  %s13 = smul.u32 0, 128
  %v14 = vstv %s13
  %v15 = vadd.s32 %v12, %v14
  %vm16 = vcmp.lt.s32.totalorder %v15, 8
  %v17 = vld [vmem:[%s0] sm:$0x1f]
  %v18 = vld [vmem:[%s1] sm:$0x3]
  %vm19 = vcmask 1041408
  %v20 = vsel %vm19, %v17, -inf
  %v21 = vrot.slane %v20, 4
  %v22 = vmax.f32 %v20, %v21
  %v23 = vrot.slane %v22, 2
  %v24 = vmax.f32 %v22, %v23
  %v25 = vrot.slane %v24, 1
  %v26 = vmax.f32 %v24, %v25
  %v27 = vsub.f32 %v17, %v26
  %v28 = vmul.f32 %v27, 1.442695
  %v29 = vpow.pop %v28
  %v30 = vsel %vm19, %v29, 0.0
  %v31 = vrot.slane %v30, 4
  %v32 = vadd.f32 %v30, %v31
  %v33 = vrot.slane %v32, 2
  %v34 = vadd.f32 %v32, %v33
  %v35 = vrot.slane %v34, 1
  %v36 = vadd.f32 %v34, %v35
  %v37 = vlog2.pop %v36
  %v38 = vmul.f32 %v37, 0.6931472
  %v39 = vlaneseq
  %v40 = vshrl.u32 %v39, 7
  %v41 = vlaneseq
  %v42 = vshrl.u32 %v41, 7
  %v43 = vsub.s32 0, %v42
  %v44 = vrot.slane %v18, %v43
  %vm45 = vcmp.eq.s32.totalorder %v40, %v44
  %v46 = vsel %vm45, %v17, 0.0
  %v47 = vsel %vm19, %v46, 0.0
  %v48 = vrot.slane %v47, 4
  %v49 = vadd.f32 %v47, %v48
  %v50 = vrot.slane %v49, 2
  %v51 = vadd.f32 %v49, %v50
  %v52 = vrot.slane %v51, 1
  %v53 = vadd.f32 %v51, %v52
  %vm54 = vcmp.ne.s32.totalorder %v18, 4294967196
  %vm55 = vmand %vm54, %vm16
  %v56 = vadd.f32 %v26, %v38
  %v57 = vsub.f32 %v56, %v53
  %v58 = vsel %vm55, %v57, 0.0
  %v59 = vsel %vm55, 1, 0
  %v60 = vcvt.s32.f32 %v59
  %vm61 = vcmask 1044482
  %v62 = vsel %vm61, %v17, -inf
  %v63 = vrot.slane %v62, 4
  %v64 = vmax.f32 %v62, %v63
  %v65 = vrot.slane %v64, 2
  %v66 = vmax.f32 %v64, %v65
  %v67 = vrot.slane %v66, 1
  %v68 = vmax.f32 %v66, %v67
  %v69 = vsub.f32 %v17, %v68
  %v70 = vmul.f32 %v69, 1.442695
  %v71 = vpow.pop %v70
  %v73 = vrot.slane %v71, 2
  %vm75 = vcmask 1042432
  %v76 = vsel %vm75, %v73, 0.0
  %v77 = vrot.slane %v76, 4
  %v78 = vadd.f32 %v76, %v77
  %v79 = vrot.slane %v78, 2
  %v80 = vadd.f32 %v78, %v79
  %v81 = vrot.slane %v80, 1
  %v82 = vadd.f32 %v80, %v81
  %v83 = vlog2.pop %v82
  %v84 = vmul.f32 %v83, 0.6931472
  %v85 = vlaneseq
  %v86 = vshrl.u32 %v85, 7
  %v87 = vsub.s32 1, %v86
  %v88 = vrot.slane %v18, %v87
  %vm89 = vcmp.eq.s32.totalorder %v40, %v88
  %v91 = vrot.slane %v17, 2
  %v93 = vsel %vm89, %v91, 0.0
  %v94 = vsel %vm75, %v93, 0.0
  %v95 = vrot.slane %v94, 4
  %v96 = vadd.f32 %v94, %v95
  %v97 = vrot.slane %v96, 2
  %v98 = vadd.f32 %v96, %v97
  %v99 = vrot.slane %v98, 1
  %v100 = vadd.f32 %v98, %v99
  %v101 = vadd.f32 %v68, %v84
  %v102 = vsub.f32 %v101, %v100
  %v103 = vsel %vm55, %v102, 0.0
  %v105 = vrot.slane %v60, 6
  %vm107 = vcmask 1040384
  %v108 = vsel %vm107, %v58, %v103
  %v109 = vsel %vm19, %v108, %v105
  %v110 = vsel %vm75, %v109, %v105
  %111 = vst [vmem:[%s2] sm:$0xf] %v110
  // Predicated region
  $region10: #{_ce_forward.1} parent=0 // pred_check
    _
  $region11: #{_ce_forward.1} parent=0 // pred_check_branch
    %113 = sbr.rel (0) target = $region13
  $region12: #{_ce_forward.1} parent=0 // pred_region
    _
  $region13: #{_ce_forward.1} parent=0 // pred_fallthru
    _
  // Predicated region
  $region14: #{_ce_forward.1} parent=0 // pred_check
    _
  $region15: #{_ce_forward.1} parent=0 // pred_check_branch
    %115 = sbr.rel (0) target = $region17
  $region16: #{_ce_forward.1} parent=0 // pred_region
    _
  $region17: #{_ce_forward.1} parent=0 // pred_fallthru
    _

</llo_original>
